<compile_context>
chip_gen: v7x
topology: tpu7x:2x2x1
jax: 0.10.0
libtpu: 0.0.40
codegen_flags: <defaults>
</compile_context>

<pallas_src>
import jax
import jax.numpy as jnp
from jax.experimental import pallas as pl
from jax.experimental.pallas import tpu as pltpu


def _pick_col_tile(b, m):
    """Pick a lane-dense column tile; fall back to the full array when the
    (8,128) divisibility constraint cannot be met (small inputs)."""
    if b % 8 != 0 or m % 128 != 0:
        return m
    for tn in (512, 256, 128):
        if m % tn == 0 and tn >= b and m > tn:
            return tn
    return m


def _make_top1_kernel(b, m):
    inv_count = 1.0 / float(b * m)   # mean over all B*M elements (both terms)

    def kernel(x_ref, loss_ref, diag_scr, acc_scr):
        j = pl.program_id(0)
        x = x_ref[...]                                    # (B, TN) f32

        @pl.when(j == 0)
        def _():
            # diag[i] = logit[i, i]; lives in the first column tile (TN >= B).
            sq = x[:, :b]                                 # (B, B) corner
            r = jax.lax.broadcasted_iota(jnp.int32, (b, b), 0)
            c = jax.lax.broadcasted_iota(jnp.int32, (b, b), 1)
            diag_scr[...] = jnp.sum(jnp.where(r == c, sq, 0.0),
                                    axis=1, keepdims=True)      # (B, 1)
            acc_scr[0] = jnp.float32(0.0)

        # diff = logit - diag  (== -(diag.expand_as(logit) - logit))
        diff = x - diag_scr[...]
        partial = (jnp.sum(jax.nn.sigmoid(diff)) +
                   jnp.sum(jax.nn.sigmoid(x * x)))
        acc_scr[0] = acc_scr[0] + partial
        # Running value written every step; last grid step leaves the answer.
        loss_ref[0, 0] = acc_scr[0] * inv_count

    return kernel


def top1_loss(logit):
    """Pallas TOP1 loss.  logit: (B, M) with M >= B (as required by
    torch.diag(...).expand_as(logit) in the reference)."""
    logit = logit.astype(jnp.float32)
    b, m = logit.shape
    assert m >= b, "TOP1Loss requires logit.shape[1] >= logit.shape[0]"

    tn = _pick_col_tile(b, m)
    grid = (m // tn,)

    out = pl.pallas_call(
        _make_top1_kernel(b, m),
        out_shape=jax.ShapeDtypeStruct((1, 1), jnp.float32),
        grid=grid,
        in_specs=[pl.BlockSpec((b, tn), lambda j: (0, j))],
        out_specs=pl.BlockSpec(memory_space=pltpu.MemorySpace.SMEM),
        scratch_shapes=[pltpu.VMEM((b, 1), jnp.float32),   # diagonal
                        pltpu.SMEM((1,), jnp.float32)],    # running sum
        compiler_params=pltpu.CompilerParams(
            dimension_semantics=("arbitrary",)),
    )(logit)
    return out[0, 0]


def top1_loss_ref(logit):
    """Pure-JAX reference mirroring the PyTorch forward exactly."""
    logit = logit.astype(jnp.float32)
    d = jnp.diagonal(logit)                               # length B (M >= B)
    diff = logit - d[:, None]                             # == -(diag - logit)
    return (jax.nn.sigmoid(diff).mean() +
            jax.nn.sigmoid(logit ** 2).mean())


if __name__ == "__main__":
    key = jax.random.PRNGKey(0)
    k1, k2 = jax.random.split(key)

    # Canonical GRU4REC usage: square (B, B) sampled-score matrix.
    logit_square = jax.random.normal(k1, (8, 8), jnp.float32)
    # Wider case exercising the lane-dense column-tiled accumulation path.
    logit_wide = jax.random.normal(k2, (8, 1024), jnp.float32)

    for lg in (logit_square, logit_wide):
        loss = top1_loss(lg)
        ref = top1_loss_ref(lg)
        jax.block_until_ready((loss, ref))
        assert jnp.allclose(loss, ref, rtol=1e-5, atol=1e-5), (
            float(loss), float(ref))

    print("KERNEL_OK")
</pallas_src>

<mosaic_0001>
module attributes {stable_mosaic.version = 11 : i64} {
  func.func @kernel(%arg0: i32, %arg1: memref<8x8xf32, #tpu.memory_space<vmem>>, %arg2: memref<1x1xf32, #tpu.memory_space<smem>>, %arg3: memref<8x1xf32, #tpu.memory_space<vmem>>, %arg4: memref<1xf32, #tpu.memory_space<smem>>) attributes {dimension_semantics = [#tpu.dimension_semantics<arbitrary>], iteration_bounds = array<i64: 1>, scalar_prefetch = 0 : i64, scratch_operands = 2 : i64, tpu.core_type = #tpu.core_type<tc>, window_params = [{transform_indices = @transform_0, window_bounds = array<i64: 8, 8>}, {transform_indices = @transform_1, window_bounds = array<i64: 1, 1>}]} {
    %c0 = arith.constant 0 : index
    %c0_0 = arith.constant 0 : index
    %0 = vector.load %arg1[%c0, %c0_0] : memref<8x8xf32, #tpu.memory_space<vmem>>, vector<8x8xf32>
    %c0_i32 = arith.constant 0 : i32
    %1 = arith.cmpi eq, %arg0, %c0_i32 : i32
    %2 = arith.extui %1 : i1 to i32
    %c0_i32_1 = arith.constant 0 : i32
    %3 = arith.cmpi ne, %2, %c0_i32_1 : i32
    scf.if %3 {
      %33 = tpu.iota {dimensions = array<i32: 0>} : vector<8x8xi32>
      %34 = tpu.iota {dimensions = array<i32: 1>} : vector<8x8xi32>
      %35 = arith.cmpi eq, %33, %34 : vector<8x8xi32>
      %cst_13 = arith.constant 0.000000e+00 : f32
      %36 = vector.broadcast %cst_13 : f32 to vector<8x8xf32>
      %37 = arith.select %35, %0, %36 : vector<8x8xi1>, vector<8x8xf32>
      %cst_14 = arith.constant dense<0.000000e+00> : vector<8xf32>
      %38 = vector.multi_reduction <add>, %37, %cst_14 [1] : vector<8x8xf32> to vector<8xf32>
      %39 = vector.shape_cast %38 : vector<8xf32> to vector<8x1xf32>
      %c0_15 = arith.constant 0 : index
      %c0_16 = arith.constant 0 : index
      %40 = vector.load %arg3[%c0_15, %c0_16] : memref<8x1xf32, #tpu.memory_space<vmem>>, vector<8x1xf32>
      tpu.vector_store %arg3[%c0_15, %c0_16], %39 {strides = array<i32>} : memref<8x1xf32, #tpu.memory_space<vmem>>, vector<8x1xf32>,
      %cst_17 = arith.constant 0.000000e+00 : f32
      %c0_18 = arith.constant 0 : index
      %41 = memref.load %arg4[%c0_18] : memref<1xf32, #tpu.memory_space<smem>>
      memref.store %cst_17, %arg4[%c0_18] : memref<1xf32, #tpu.memory_space<smem>>
    } else {
    }
    %c0_2 = arith.constant 0 : index
    %c0_3 = arith.constant 0 : index
    %4 = vector.load %arg3[%c0_2, %c0_3] : memref<8x1xf32, #tpu.memory_space<vmem>>, vector<8x1xf32>
    %5 = vector.broadcast %4 : vector<8x1xf32> to vector<8x8xf32>
    %6 = arith.subf %0, %5 : vector<8x8xf32>
    %7 = arith.negf %6 : vector<8x8xf32>
    %8 = math.exp %7 : vector<8x8xf32>
    %cst = arith.constant 1.000000e+00 : f32
    %9 = vector.broadcast %cst : f32 to vector<8x8xf32>
    %10 = arith.addf %9, %8 : vector<8x8xf32>
    %11 = arith.divf %9, %10 : vector<8x8xf32>
    %12 = vector.shape_cast %11 : vector<8x8xf32> to vector<1x8x8xf32>
    %cst_4 = arith.constant dense<0.000000e+00> : vector<1xf32>
    %13 = vector.multi_reduction <add>, %12, %cst_4 [1, 2] : vector<1x8x8xf32> to vector<1xf32>
    %14 = vector.shape_cast %13 : vector<1xf32> to vector<1x1x1xf32>
    %15 = vector.extract %14[0, 0, 0] : f32 from vector<1x1x1xf32>
    %16 = arith.mulf %0, %0 : vector<8x8xf32>
    %17 = arith.negf %16 : vector<8x8xf32>
    %18 = math.exp %17 : vector<8x8xf32>
    %cst_5 = arith.constant 1.000000e+00 : f32
    %19 = vector.broadcast %cst_5 : f32 to vector<8x8xf32>
    %20 = arith.addf %19, %18 : vector<8x8xf32>
    %21 = arith.divf %19, %20 : vector<8x8xf32>
    %22 = vector.shape_cast %21 : vector<8x8xf32> to vector<1x8x8xf32>
    %cst_6 = arith.constant dense<0.000000e+00> : vector<1xf32>
    %23 = vector.multi_reduction <add>, %22, %cst_6 [1, 2] : vector<1x8x8xf32> to vector<1xf32>
    %24 = vector.shape_cast %23 : vector<1xf32> to vector<1x1x1xf32>
    %25 = vector.extract %24[0, 0, 0] : f32 from vector<1x1x1xf32>
    %26 = arith.addf %15, %25 : f32
    %c0_7 = arith.constant 0 : index
    %27 = memref.load %arg4[%c0_7] : memref<1xf32, #tpu.memory_space<smem>>
    %28 = arith.addf %27, %26 : f32
    %c0_8 = arith.constant 0 : index
    %29 = memref.load %arg4[%c0_8] : memref<1xf32, #tpu.memory_space<smem>>
    memref.store %28, %arg4[%c0_8] : memref<1xf32, #tpu.memory_space<smem>>
    %c0_9 = arith.constant 0 : index
    %30 = memref.load %arg4[%c0_9] : memref<1xf32, #tpu.memory_space<smem>>
    %cst_10 = arith.constant 1.562500e-02 : f32
    %31 = arith.mulf %30, %cst_10 : f32
    %c0_11 = arith.constant 0 : index
    %c0_12 = arith.constant 0 : index
    %32 = memref.load %arg2[%c0_11, %c0_12] : memref<1x1xf32, #tpu.memory_space<smem>>
    memref.store %31, %arg2[%c0_11, %c0_12] : memref<1x1xf32, #tpu.memory_space<smem>>
    return
  }
  func.func @transform_0(%arg0: i32) -> (i32, i32) {
    %c0_i32 = arith.constant 0 : i32
    %c0_i32_0 = arith.constant 0 : i32
    return %c0_i32, %arg0 : i32, i32
  }
  func.func @transform_1(%arg0: i32) -> (i32, i32) {
    %c0_i32 = arith.constant 0 : i32
    %c0_i32_0 = arith.constant 0 : i32
    %c0_i32_1 = arith.constant 0 : i32
    return %c0_i32, %c0_i32_0 : i32, i32
  }
}

</mosaic_0001>

<llo_original>
// kernel: tpu_custom_call.1
$region0: #{tpu_custom_call.1}
  #allocation0 [shape = 'u32[]', space=smem, size = 0x4, offset = 0x4, fixed_abs, tag = 'smem constant byte address 0x4 - core index']
  #allocation1 [shape = 'u32[144,128]{1,0:T(1,128)}', space=vmem, size = 0x12000, scoped, tag = 'internal scratch']
  #allocation2 [shape = 'f32[8,1]{1,0:T(8,128)}', space=vmem, size = 0x1000, scoped, tag = 'scratch operand']
  #allocation3 [shape = 'f32[1]{0:T(128)}', space=smem, size = 0x200, scoped, tag = 'scratch operand']
  %s0 = inlined_call_operand.hbm [shape: f32[8,8], index: 0, kind: input, shape index: {}]
  %s1 = inlined_call_operand.hbm [shape: f32[1,1], index: 1, kind: output, shape index: {}]
  %s2 = sld [smem:[#allocation0]]
  $region22: #{tpu_custom_call.1} parent=0
    _
  %s4 = ssub.s32 1, %s2
  %s5 = scalar_select 0, %s4, %s2
  $region1: #{tpu_custom_call.1} parent=0
    #allocation4 [shape = 'u8[4096]{0}', space=vmem, size = 0x1000, scoped, tag = 'input window, operand 0, single buffered']
    #allocation5 [shape = 's32[1]{0}', space=sflag, size = 0x4, scoped, tag = 'scoped memory for tpu_custom_call.1']
    #allocation6 [shape = 's32[1]{0}', space=sflag, size = 0x4, scoped, tag = 'scoped memory for tpu_custom_call.1']
    #allocation7 [shape = 'u8[512]{0}', space=smem, size = 0x200, scoped, tag = 'output window, operand 0, single buffered']
    %6 = vsyncpa [#allocation5], 0
    %7 = vsyncpa [#allocation6], 0
    // Predicated region
    $region2: #{tpu_custom_call.1} parent=1 // pred_check
      _
    $region3: #{tpu_custom_call.1} parent=1 // pred_check_branch
      %9 = sbr.rel (0) target = $region5
    $region4: #{tpu_custom_call.1} parent=1 // pred_region
      %s11 = ssub.s32 128, 128
      %12 = vsyncadd [#allocation5], %s11
      %s14 = sshll.u32 [#allocation4], 4
      %s15 = int_to_ptr.vmem [resolvable:$true] %s14
      %17 = dma.hbm_to_vmem [thread:$0]  %s0, 128, %s15, [#allocation5]
    $region5: #{tpu_custom_call.1} parent=1 // pred_fallthru
      _
    // Predicated region
    $region6: #{tpu_custom_call.1} parent=1 // pred_check
      _
    $region7: #{tpu_custom_call.1} parent=1 // pred_check_branch
      %19 = sbr.rel (0) target = $region9
    $region8: #{tpu_custom_call.1} parent=1 // pred_region
      %20 = dma.done [#allocation5], 128
    $region9: #{tpu_custom_call.1} parent=1 // pred_fallthru
      _
    %v21 = vld [vmem:[#allocation4] sm:$0xff]
    %p22 = scmp.eq.s32.totalorder 0, 0
    // Predicated region
    $region10: #{tpu_custom_call.1} parent=1 // pred_check
      %p23 = pneg %p22
    $region11: #{tpu_custom_call.1} parent=1 // pred_check_branch
      %25 = sbr.rel (%p23) target = $region13
    $region12: #{tpu_custom_call.1} parent=1 // pred_region
      %v26 = vlaneseq
      %v27 = vshrl.u32 %v26, 7
      %v28 = vlaneseq
      %v29 = vand.u32 %v28, 127
      %vm30 = vcmp.eq.s32.totalorder %v27, %v29
      %v31 = vsel %vm30, %v21, 0.0
      %vm32 = vcmask 64512
      %v33 = vsel %vm32, %v31, 0.0
      %34 = vadd.xlane.f32.xlu0 %v33
      %v35 = vpop.xlane.xlu0 %34
      %vm36 = vcmask 7168
      %37 = vst.msk [vmem:[#allocation2] sm:$0xff] %vm36, %v35
      %s38 = scalar_lea.smem [#allocation3], 0
      %39 = sst [smem:[%s38]] 0.0
    $region13: #{tpu_custom_call.1} parent=1 // pred_fallthru
      _
    %v40 = vld [vmem:[#allocation2] sm:$0xff]
    %42 = vset.pattern.permute.xlu0 0
    %43 = vperm.xlu0 %42, %v40
    %v44 = vpop.permute.xlu0 %43
    %v46 = vsub.f32 %v21, %v44
    %v47 = vxor.u32 %v46, 2147483648
    %v48 = vmul.f32 %v47, 1.442695
    %v49 = vpow.pop %v48
    %v50 = vadd.f32 %v49, 1.0
    %v51 = vrcp.pop %v50
    %v52 = vmul.f32 1.0, %v51
    %vm53 = vcmask 64512
    %v54 = vsel %vm53, %v52, 0.0
    %55 = vadd.xlane.f32.xlu0 %v54
    %v56 = vpop.xlane.xlu0 %55
    %v57 = vrot.slane %v56, 4
    %v58 = vadd.f32 %v56, %v57
    %v59 = vrot.slane %v58, 2
    %v60 = vadd.f32 %v58, %v59
    %v61 = vrot.slane %v60, 1
    %v62 = vadd.f32 %v60, %v61
    %s63 = vtos %v62
    %v64 = vmul.f32 %v21, %v21
    %v65 = vxor.u32 %v64, 2147483648
    %v66 = vmul.f32 %v65, 1.442695
    %v67 = vpow.pop %v66
    %v68 = vadd.f32 %v67, 1.0
    %v69 = vrcp.pop %v68
    %v70 = vmul.f32 1.0, %v69
    %v71 = vsel %vm53, %v70, 0.0
    %72 = vadd.xlane.f32.xlu0 %v71
    %v73 = vpop.xlane.xlu0 %72
    %v74 = vrot.slane %v73, 4
    %v75 = vadd.f32 %v73, %v74
    %v76 = vrot.slane %v75, 2
    %v77 = vadd.f32 %v75, %v76
    %v78 = vrot.slane %v77, 1
    %v79 = vadd.f32 %v77, %v78
    %s80 = vtos %v79
    %s81 = sadd.f32 %s63, %s80
    %s82 = sld [smem:[#allocation3]]
    %s83 = sadd.f32 %s82, %s81
    %s84 = scalar_lea.smem [#allocation3], 0
    %85 = sst [smem:[%s84]] %s83
    %s86 = sld [smem:[#allocation3]]
    %s87 = smul.f32 %s86, 0.015625
    %s88 = scalar_lea.smem [#allocation7], 0
    %89 = sst [smem:[%s88]] %s87
    // Predicated region
    $region14: #{tpu_custom_call.1} parent=1 // pred_check
      _
    $region15: #{tpu_custom_call.1} parent=1 // pred_check_branch
      %91 = sbr.rel (0) target = $region17
    $region16: #{tpu_custom_call.1} parent=1 // pred_region
      %s93 = ssub.s32 16, 16
      %94 = vsyncadd [#allocation6], %s93
      %97 = dma.smem_to_hbm [#allocation7], 16, %s1, [#allocation6]
    $region17: #{tpu_custom_call.1} parent=1 // pred_fallthru
      _
    // Predicated region
    $region18: #{tpu_custom_call.1} parent=1 // pred_check
      _
    $region19: #{tpu_custom_call.1} parent=1 // pred_check_branch
      %99 = sbr.rel (0) target = $region21
    $region20: #{tpu_custom_call.1} parent=1 // pred_region
      %100 = dma.done [#allocation6], 16
    $region21: #{tpu_custom_call.1} parent=1 // pred_fallthru
      _
    %101 = sfence
    %102 = vsyncpa [#allocation5], 1
    %103 = vsyncpa [#allocation6], 1

</llo_original>
